<compile_context>
chip_gen: v5e
topology: v5e:2x2
jax: 0.10.0
libtpu: 0.0.40
codegen_flags: <defaults>
</compile_context>

<pallas_src>
import functools

import jax
import jax.numpy as jnp
from jax.experimental import pallas as pl
from jax.experimental.pallas import tpu as pltpu


def _relic_loss_kernel(x_ref, xp_ref, out_ref, gram_ref, nsq_ref, *, mxu_dtype):
    k = pl.program_id(0)
    nk = pl.num_programs(0)

    @pl.when(k == 0)
    def _init():
        gram_ref[...] = jnp.zeros_like(gram_ref)
        nsq_ref[...] = jnp.zeros_like(nsq_ref)

    x_in = x_ref[...]     # (B, tk), native input dtype
    xp_in = xp_ref[...]   # (B, tk)

    # Squared-norm partials stay in f32 (exact cosine normalization), packed
    # into the two leading lanes of a single scratch buffer.
    x32 = x_in.astype(jnp.float32)
    xp32 = xp_in.astype(jnp.float32)
    nsq_ref[:, 0:1] += jnp.sum(x32 * x32, axis=-1, keepdims=True)
    nsq_ref[:, 1:2] += jnp.sum(xp32 * xp32, axis=-1, keepdims=True)

    # MXU sees mxu_dtype (bf16 by default: native MXU dtype on v5e/v6e/v7x).
    # Contract the feature (lane) axis of both operands directly -- no .T.
    xa = x_in.astype(mxu_dtype)
    xb = xp_in.astype(mxu_dtype)
    gram_ref[...] += jax.lax.dot_general(
        xa, xb, dimension_numbers=(((1,), (1,)), ((), ())),
        preferred_element_type=jnp.float32)

    @pl.when(k == nk - 1)
    def _finalize():
        eps = jnp.float32(1e-12)
        b = gram_ref.shape[0]
        inv_nx = jax.lax.rsqrt(nsq_ref[:, 0:1] + eps)                    # (B, 1)
        inv_np_t = jnp.transpose(jax.lax.rsqrt(nsq_ref[:, 1:2] + eps))   # (1, B), tiny transpose

        # sim[i, j] = gram[i, j] * inv|x_i| * inv|xp_j|: two broadcasts, no BxB transpose.
        sim = gram_ref[...] * inv_nx * inv_np_t                          # (B, B)

        # Input-side log-softmax partition: lane (axis=-1) logsumexp per row.
        m_r = jnp.max(sim, axis=-1, keepdims=True)
        lse_r = jnp.log(jnp.sum(jnp.exp(sim - m_r), axis=-1, keepdims=True)) + m_r

        # Target side: t[i, j] = exp(sim[j, i] - lse_c[i]) -> everything is a
        # sublane (axis=0) reduction over sim; no sim.T buffer is built.
        m_c = jnp.max(sim, axis=0, keepdims=True)                        # (1, B)
        e_c = jnp.exp(sim - m_c)                                         # (B, B)
        z_c = jnp.sum(e_c, axis=0, keepdims=True)                        # (1, B)
        lse_c = jnp.log(z_c) + m_c                                       # (1, B)
        inv_z_c = 1.0 / z_c                                              # only B divides

        # term_a = sum_ij t_ij * sim_ji : pure column reductions.
        term_a = jnp.sum(jnp.sum(e_c * sim, axis=0, keepdims=True) * inv_z_c)
        # term_b = sum_ij t_ij * sim_ij : transpose-coupled -> the single BxB transpose.
        w = e_c * inv_z_c
        term_b = jnp.sum(w * jnp.transpose(sim))

        # B * loss = term_a - term_b + sum_i lse_r_i - sum_i lse_c_i
        # (softmax targets > 0, so F.kl_div's zeroing branch never fires).
        kl = term_a - term_b + jnp.sum(lse_r) - jnp.sum(lse_c)
        out_ref[0, 0] = kl / jnp.float32(b)                              # reduction='batchmean'


def _choose_feature_tile(B, Dp, itemsize):
    """Largest MXU-friendly tile of the (padded) feature axis that keeps the
    double-buffered input tiles within ~8 MiB (VMEM-aware for v7x)."""
    for tk in (512, 256, 128):
        if Dp % tk:
            continue
        if 4 * B * tk * itemsize > (8 << 20):   # 2 inputs x 2 buffers x B x tk
            continue
        return tk
    return 128  # Dp is always a multiple of 128


def _vmem_limit_bytes(B, tk, in_itemsize):
    """Scoped-VMEM request: double-buffered inputs + resident gram + packed norm
    scratch + untiled-finalize temporaries, clamped per chip generation."""
    in_bufs = 2 * 2 * B * tk * in_itemsize        # 2 inputs x 2 buffers
    gram = B * B * 4                              # resident f32 accumulator
    norms = B * 128 * 4                           # lane-padded (B, 2) scratch
    finalize = 4 * B * B * 4                      # sim, e_c, w, sim^T live temps
    est = in_bufs + gram + norms + finalize + (2 << 20)
    try:
        phys = pltpu.get_tpu_info().vmem_capacity_bytes
    except Exception:
        phys = 64 << 20                           # unknown chip: assume v7x-sized VMEM
    cap = int(phys * 0.8)                         # ~100 MiB on v5e/v6e, ~51 MiB on v7x
    return int(min(max(est, 32 << 20), cap))


def relic_loss(x, x_pair, *, mxu_dtype=jnp.bfloat16):
    """Pallas-backed RELIC loss (cosine sim_func). x, x_pair: (B, D) -> scalar f32.

    mxu_dtype=jnp.bfloat16 (default): bf16 MXU operands, f32 norms/softmax/KL.
    mxu_dtype=jnp.float32: exact path (matches the full-f32 reference to 1e-5).
    """
    assert x.shape == x_pair.shape and x.ndim == 2
    B, D = x.shape

    # Zero-pad the feature axis to a lane multiple: no effect on dot products or
    # norms, and the tiled, double-buffered streaming path always runs.
    Dp = pl.cdiv(D, 128) * 128
    if Dp != D:
        x = jnp.pad(x, ((0, 0), (0, Dp - D)))
        x_pair = jnp.pad(x_pair, ((0, 0), (0, Dp - D)))

    itemsize = jnp.dtype(x.dtype).itemsize
    tk = _choose_feature_tile(B, Dp, itemsize)
    nk = Dp // tk

    cost = pl.CostEstimate(
        flops=int(2 * B * B * Dp + 14 * B * B),
        transcendentals=int(2 * B * B + 4 * B),
        bytes_accessed=int(2 * B * Dp * itemsize + 4),
    )

    kernel = functools.partial(_relic_loss_kernel, mxu_dtype=mxu_dtype)

    out = pl.pallas_call(
        kernel,
        out_shape=jax.ShapeDtypeStruct((1, 1), jnp.float32),
        grid_spec=pltpu.PrefetchScalarGridSpec(
            num_scalar_prefetch=0,
            grid=(nk,),
            in_specs=[
                pl.BlockSpec((B, tk), lambda k: (0, k)),
                pl.BlockSpec((B, tk), lambda k: (0, k)),
            ],
            out_specs=pl.BlockSpec((1, 1), lambda k: (0, 0),
                                   memory_space=pltpu.MemorySpace.SMEM),
            scratch_shapes=[
                pltpu.VMEM((B, B), jnp.float32),   # gram accumulator
                pltpu.VMEM((B, 2), jnp.float32),   # packed |x|^2 / |x_pair|^2 accumulators
            ],
        ),
        compiler_params=pltpu.CompilerParams(
            dimension_semantics=("arbitrary",),
            vmem_limit_bytes=_vmem_limit_bytes(B, tk, itemsize),
        ),
        cost_estimate=cost,
    )(x, x_pair)
    return out[0, 0]


def _relic_loss_ref(x, x_pair, mxu_dtype=jnp.float32):
    """Pure-JAX reference matching the PyTorch forward (with the same optional
    bf16 rounding of the MXU operands as the kernel)."""
    x32 = x.astype(jnp.float32)
    xp32 = x_pair.astype(jnp.float32)
    inv_nx = jax.lax.rsqrt(jnp.sum(x32 * x32, axis=-1, keepdims=True) + 1e-12)
    inv_np = jax.lax.rsqrt(jnp.sum(xp32 * xp32, axis=-1, keepdims=True) + 1e-12)
    xa = x.astype(mxu_dtype).astype(jnp.float32)
    xb = x_pair.astype(mxu_dtype).astype(jnp.float32)
    gram = jnp.dot(xa, xb.T, precision=jax.lax.Precision.HIGHEST)
    sim = gram * inv_nx * inv_np.T
    logp = jax.nn.log_softmax(sim, axis=-1)
    t = jax.nn.softmax(sim.T, axis=-1)
    return jnp.sum(t * (jnp.log(t) - logp)) / sim.shape[0]


if __name__ == "__main__":
    key = jax.random.PRNGKey(0)
    k1, k2 = jax.random.split(key)
    B, D = 8, 32  # small representation tensors
    x = jax.random.normal(k1, (B, D), dtype=jnp.float32)
    x_pair = x + 0.1 * jax.random.normal(k2, (B, D), dtype=jnp.float32)

    # Fast path (default): bf16 MXU operands, f32 norms/softmax/KL.
    loss_bf16 = jax.block_until_ready(relic_loss(x, x_pair))
    ref_bf16 = jax.block_until_ready(_relic_loss_ref(x, x_pair, mxu_dtype=jnp.bfloat16))
    assert jnp.isfinite(loss_bf16), "non-finite loss (bf16 MXU path)"
    assert abs(float(loss_bf16) - float(ref_bf16)) < 1e-5, (float(loss_bf16), float(ref_bf16))

    # Exact path: f32 MXU operands vs. full-f32 reference.
    loss_f32 = jax.block_until_ready(relic_loss(x, x_pair, mxu_dtype=jnp.float32))
    ref_f32 = jax.block_until_ready(_relic_loss_ref(x, x_pair, mxu_dtype=jnp.float32))
    assert jnp.isfinite(loss_f32), "non-finite loss (f32 MXU path)"
    assert abs(float(loss_f32) - float(ref_f32)) < 1e-5, (float(loss_f32), float(ref_f32))

    print("KERNEL_OK")
</pallas_src>

<mosaic_0001>
module attributes {stable_mosaic.version = 11 : i64} {
  func.func @_relic_loss_kernel(%arg0: i32, %arg1: memref<8x128xf32, #tpu.memory_space<vmem>>, %arg2: memref<8x128xf32, #tpu.memory_space<vmem>>, %arg3: memref<1x1xf32, #tpu.memory_space<smem>>, %arg4: memref<8x8xf32, #tpu.memory_space<vmem>>, %arg5: memref<8x2xf32, #tpu.memory_space<vmem>>) attributes {dimension_semantics = [#tpu.dimension_semantics<arbitrary>], iteration_bounds = array<i64: 1>, scalar_prefetch = 0 : i64, scratch_operands = 2 : i64, tpu.core_type = #tpu.core_type<tc>, window_params = [{transform_indices = @transform_0, window_bounds = array<i64: 8, 128>}, {transform_indices = @transform_1, window_bounds = array<i64: 8, 128>}, {transform_indices = @transform_2, window_bounds = array<i64: 1, 1>}]} {
    %c0_i32 = arith.constant 0 : i32
    %0 = arith.cmpi eq, %arg0, %c0_i32 : i32
    %1 = arith.extui %0 : i1 to i32
    %c0_i32_0 = arith.constant 0 : i32
    %2 = arith.cmpi ne, %1, %c0_i32_0 : i32
    scf.if %2 {
      %cst_19 = arith.constant 0.000000e+00 : f32
      %26 = vector.broadcast %cst_19 : f32 to vector<8x8xf32>
      %c0_20 = arith.constant 0 : index
      %c0_21 = arith.constant 0 : index
      %27 = vector.load %arg4[%c0_20, %c0_21] : memref<8x8xf32, #tpu.memory_space<vmem>>, vector<8x8xf32>
      tpu.vector_store %arg4[%c0_20, %c0_21], %26 {strides = array<i32>} : memref<8x8xf32, #tpu.memory_space<vmem>>, vector<8x8xf32>,
      %cst_22 = arith.constant 0.000000e+00 : f32
      %28 = vector.broadcast %cst_22 : f32 to vector<8x2xf32>
      %c0_23 = arith.constant 0 : index
      %c0_24 = arith.constant 0 : index
      %29 = vector.load %arg5[%c0_23, %c0_24] : memref<8x2xf32, #tpu.memory_space<vmem>>, vector<8x2xf32>
      tpu.vector_store %arg5[%c0_23, %c0_24], %28 {strides = array<i32>} : memref<8x2xf32, #tpu.memory_space<vmem>>, vector<8x2xf32>,
    } else {
    }
    %c0 = arith.constant 0 : index
    %c0_1 = arith.constant 0 : index
    %3 = vector.load %arg1[%c0, %c0_1] : memref<8x128xf32, #tpu.memory_space<vmem>>, vector<8x128xf32>
    %c0_2 = arith.constant 0 : index
    %c0_3 = arith.constant 0 : index
    %4 = vector.load %arg2[%c0_2, %c0_3] : memref<8x128xf32, #tpu.memory_space<vmem>>, vector<8x128xf32>
    %c0_4 = arith.constant 0 : index
    %c0_5 = arith.constant 0 : index
    %5 = vector.load %arg5[%c0_4, %c0_5] : memref<8x2xf32, #tpu.memory_space<vmem>>, vector<8x1xf32>
    %6 = arith.mulf %3, %3 : vector<8x128xf32>
    %cst = arith.constant dense<0.000000e+00> : vector<8xf32>
    %7 = vector.multi_reduction <add>, %6, %cst [1] : vector<8x128xf32> to vector<8xf32>
    %8 = vector.shape_cast %7 : vector<8xf32> to vector<8x1xf32>
    %9 = arith.addf %5, %8 : vector<8x1xf32>
    %c0_6 = arith.constant 0 : index
    %c0_7 = arith.constant 0 : index
    %10 = vector.load %arg5[%c0_6, %c0_7] : memref<8x2xf32, #tpu.memory_space<vmem>>, vector<8x1xf32>
    tpu.vector_store %arg5[%c0_6, %c0_7], %9 {strides = array<i32>} : memref<8x2xf32, #tpu.memory_space<vmem>>, vector<8x1xf32>,
    %c0_8 = arith.constant 0 : index
    %c1 = arith.constant 1 : index
    %11 = vector.load %arg5[%c0_8, %c1] : memref<8x2xf32, #tpu.memory_space<vmem>>, vector<8x1xf32>
    %12 = arith.mulf %4, %4 : vector<8x128xf32>
    %cst_9 = arith.constant dense<0.000000e+00> : vector<8xf32>
    %13 = vector.multi_reduction <add>, %12, %cst_9 [1] : vector<8x128xf32> to vector<8xf32>
    %14 = vector.shape_cast %13 : vector<8xf32> to vector<8x1xf32>
    %15 = arith.addf %11, %14 : vector<8x1xf32>
    %c0_10 = arith.constant 0 : index
    %c1_11 = arith.constant 1 : index
    %16 = vector.load %arg5[%c0_10, %c1_11] : memref<8x2xf32, #tpu.memory_space<vmem>>, vector<8x1xf32>
    tpu.vector_store %arg5[%c0_10, %c1_11], %15 {strides = array<i32>} : memref<8x2xf32, #tpu.memory_space<vmem>>, vector<8x1xf32>,
    %17 = arith.truncf %3 : vector<8x128xf32> to vector<8x128xbf16>
    %18 = arith.truncf %4 : vector<8x128xf32> to vector<8x128xbf16>
    %c0_12 = arith.constant 0 : index
    %c0_13 = arith.constant 0 : index
    %19 = vector.load %arg4[%c0_12, %c0_13] : memref<8x8xf32, #tpu.memory_space<vmem>>, vector<8x8xf32>
    %cst_14 = arith.constant dense<0.000000e+00> : vector<8x8xf32>
    %20 = tpu.matmul %17, %18, %cst_14 {dimension_numbers = #tpu.dot_dimension_numbers<[1], [1], [0], [0], [0, 0, 1, 0], [], []>} : vector<8x128xbf16>, vector<8x128xbf16>, vector<8x8xf32> -> vector<8x8xf32>
    %21 = arith.addf %19, %20 : vector<8x8xf32>
    %c0_15 = arith.constant 0 : index
    %c0_16 = arith.constant 0 : index
    %22 = vector.load %arg4[%c0_15, %c0_16] : memref<8x8xf32, #tpu.memory_space<vmem>>, vector<8x8xf32>
    tpu.vector_store %arg4[%c0_15, %c0_16], %21 {strides = array<i32>} : memref<8x8xf32, #tpu.memory_space<vmem>>, vector<8x8xf32>,
    %c0_i32_17 = arith.constant 0 : i32
    %23 = arith.cmpi eq, %arg0, %c0_i32_17 : i32
    %24 = arith.extui %23 : i1 to i32
    %c0_i32_18 = arith.constant 0 : i32
    %25 = arith.cmpi ne, %24, %c0_i32_18 : i32
    scf.if %25 {
      %c0_19 = arith.constant 0 : index
      %c0_20 = arith.constant 0 : index
      %26 = vector.load %arg5[%c0_19, %c0_20] : memref<8x2xf32, #tpu.memory_space<vmem>>, vector<8x1xf32>
      %cst_21 = arith.constant 9.99999996E-13 : f32
      %27 = vector.broadcast %cst_21 : f32 to vector<8x1xf32>
      %28 = arith.addf %26, %27 : vector<8x1xf32>
      %29 = math.rsqrt %28 : vector<8x1xf32>
      %c0_22 = arith.constant 0 : index
      %c1_23 = arith.constant 1 : index
      %30 = vector.load %arg5[%c0_22, %c1_23] : memref<8x2xf32, #tpu.memory_space<vmem>>, vector<8x1xf32>
      %cst_24 = arith.constant 9.99999996E-13 : f32
      %31 = vector.broadcast %cst_24 : f32 to vector<8x1xf32>
      %32 = arith.addf %30, %31 : vector<8x1xf32>
      %33 = math.rsqrt %32 : vector<8x1xf32>
      %34 = tpu.transpose %33, [1, 0] : vector<8x1xf32> -> vector<1x8xf32>
      %c0_25 = arith.constant 0 : index
      %c0_26 = arith.constant 0 : index
      %35 = vector.load %arg4[%c0_25, %c0_26] : memref<8x8xf32, #tpu.memory_space<vmem>>, vector<8x8xf32>
      %36 = vector.broadcast %29 : vector<8x1xf32> to vector<8x8xf32>
      %37 = arith.mulf %35, %36 : vector<8x8xf32>
      %38 = vector.broadcast %34 : vector<1x8xf32> to vector<8x8xf32>
      %39 = arith.mulf %37, %38 : vector<8x8xf32>
      %cst_27 = arith.constant dense<0xFF800000> : vector<8xf32>
      %40 = vector.multi_reduction <maximumf>, %39, %cst_27 [1] : vector<8x8xf32> to vector<8xf32>
      %41 = vector.shape_cast %40 : vector<8xf32> to vector<8x1xf32>
      %42 = vector.broadcast %41 : vector<8x1xf32> to vector<8x8xf32>
      %43 = arith.subf %39, %42 : vector<8x8xf32>
      %44 = math.exp %43 : vector<8x8xf32>
      %cst_28 = arith.constant dense<0.000000e+00> : vector<8xf32>
      %45 = vector.multi_reduction <add>, %44, %cst_28 [1] : vector<8x8xf32> to vector<8xf32>
      %46 = vector.shape_cast %45 : vector<8xf32> to vector<8x1xf32>
      %47 = math.log %46 : vector<8x1xf32>
      %48 = arith.addf %47, %41 : vector<8x1xf32>
      %cst_29 = arith.constant dense<0xFF800000> : vector<8xf32>
      %49 = vector.multi_reduction <maximumf>, %39, %cst_29 [0] : vector<8x8xf32> to vector<8xf32>
      %50 = vector.shape_cast %49 : vector<8xf32> to vector<1x8xf32>
      %51 = vector.broadcast %50 : vector<1x8xf32> to vector<8x8xf32>
      %52 = arith.subf %39, %51 : vector<8x8xf32>
      %53 = math.exp %52 : vector<8x8xf32>
      %cst_30 = arith.constant dense<0.000000e+00> : vector<8xf32>
      %54 = vector.multi_reduction <add>, %53, %cst_30 [0] : vector<8x8xf32> to vector<8xf32>
      %55 = vector.shape_cast %54 : vector<8xf32> to vector<1x8xf32>
      %56 = math.log %55 : vector<1x8xf32>
      %57 = arith.addf %56, %50 : vector<1x8xf32>
      %cst_31 = arith.constant 1.000000e+00 : f32
      %58 = vector.broadcast %cst_31 : f32 to vector<1x8xf32>
      %59 = arith.divf %58, %55 : vector<1x8xf32>
      %60 = arith.mulf %53, %39 : vector<8x8xf32>
      %cst_32 = arith.constant dense<0.000000e+00> : vector<8xf32>
      %61 = vector.multi_reduction <add>, %60, %cst_32 [0] : vector<8x8xf32> to vector<8xf32>
      %62 = vector.shape_cast %61 : vector<8xf32> to vector<1x8xf32>
      %63 = arith.mulf %62, %59 : vector<1x8xf32>
      %64 = vector.shape_cast %63 : vector<1x8xf32> to vector<1x1x8xf32>
      %cst_33 = arith.constant dense<0.000000e+00> : vector<1xf32>
      %65 = vector.multi_reduction <add>, %64, %cst_33 [1, 2] : vector<1x1x8xf32> to vector<1xf32>
      %66 = vector.shape_cast %65 : vector<1xf32> to vector<1x1x1xf32>
      %67 = vector.extract %66[0, 0, 0] : f32 from vector<1x1x1xf32>
      %68 = vector.broadcast %59 : vector<1x8xf32> to vector<8x8xf32>
      %69 = arith.mulf %53, %68 : vector<8x8xf32>
      %70 = tpu.transpose %39, [1, 0] : vector<8x8xf32> -> vector<8x8xf32>
      %71 = arith.mulf %69, %70 : vector<8x8xf32>
      %72 = vector.shape_cast %71 : vector<8x8xf32> to vector<1x8x8xf32>
      %cst_34 = arith.constant dense<0.000000e+00> : vector<1xf32>
      %73 = vector.multi_reduction <add>, %72, %cst_34 [1, 2] : vector<1x8x8xf32> to vector<1xf32>
      %74 = vector.shape_cast %73 : vector<1xf32> to vector<1x1x1xf32>
      %75 = vector.extract %74[0, 0, 0] : f32 from vector<1x1x1xf32>
      %76 = arith.subf %67, %75 : f32
      %77 = vector.shape_cast %48 : vector<8x1xf32> to vector<1x8x1xf32>
      %cst_35 = arith.constant dense<0.000000e+00> : vector<1xf32>
      %78 = vector.multi_reduction <add>, %77, %cst_35 [1, 2] : vector<1x8x1xf32> to vector<1xf32>
      %79 = vector.shape_cast %78 : vector<1xf32> to vector<1x1x1xf32>
      %80 = vector.extract %79[0, 0, 0] : f32 from vector<1x1x1xf32>
      %81 = arith.addf %76, %80 : f32
      %82 = vector.shape_cast %57 : vector<1x8xf32> to vector<1x1x8xf32>
      %cst_36 = arith.constant dense<0.000000e+00> : vector<1xf32>
      %83 = vector.multi_reduction <add>, %82, %cst_36 [1, 2] : vector<1x1x8xf32> to vector<1xf32>
      %84 = vector.shape_cast %83 : vector<1xf32> to vector<1x1x1xf32>
      %85 = vector.extract %84[0, 0, 0] : f32 from vector<1x1x1xf32>
      %86 = arith.subf %81, %85 : f32
      %cst_37 = arith.constant 8.000000e+00 : f32
      %87 = arith.divf %86, %cst_37 : f32
      %c0_38 = arith.constant 0 : index
      %c0_39 = arith.constant 0 : index
      %88 = memref.load %arg3[%c0_38, %c0_39] : memref<1x1xf32, #tpu.memory_space<smem>>
      memref.store %87, %arg3[%c0_38, %c0_39] : memref<1x1xf32, #tpu.memory_space<smem>>
    } else {
    }
    return
  }
  func.func @transform_0(%arg0: i32) -> (i32, i32) {
    %c0_i32 = arith.constant 0 : i32
    %c0_i32_0 = arith.constant 0 : i32
    return %c0_i32, %arg0 : i32, i32
  }
  func.func @transform_1(%arg0: i32) -> (i32, i32) {
    %c0_i32 = arith.constant 0 : i32
    %c0_i32_0 = arith.constant 0 : i32
    return %c0_i32, %arg0 : i32, i32
  }
  func.func @transform_2(%arg0: i32) -> (i32, i32) {
    %c0_i32 = arith.constant 0 : i32
    %c0_i32_0 = arith.constant 0 : i32
    %c0_i32_1 = arith.constant 0 : i32
    return %c0_i32, %c0_i32_0 : i32, i32
  }
}

</mosaic_0001>

<llo_original>
// kernel: tpu_custom_call.1
$region0: #{tpu_custom_call.1}
  #allocation0 [shape = 'u32[]', space=smem, size = 0x4, offset = 0x4, fixed_abs, tag = 'smem constant byte address 0x4 - core index']
  #allocation1 [shape = 'u32[72,128]{1,0:T(1,128)}', space=vmem, size = 0x9000, scoped, tag = 'internal scratch']
  #allocation2 [shape = 'f32[8,8]{1,0:T(8,128)}', space=vmem, size = 0x1000, scoped, tag = 'scratch operand']
  #allocation3 [shape = 'f32[8,2]{1,0:T(8,128)}', space=vmem, size = 0x1000, scoped, tag = 'scratch operand']
  %s0 = inlined_call_operand.hbm [shape: f32[8,128], index: 0, kind: input, shape index: {}]
  %s1 = inlined_call_operand.hbm [shape: f32[8,128], index: 1, kind: input, shape index: {}]
  %s2 = inlined_call_operand.hbm [shape: f32[1,1], index: 2, kind: output, shape index: {}]
  %s3 = sld [smem:[#allocation0]]
  $region34: #{tpu_custom_call.1} parent=0
    _
  %s5 = ssub.s32 1, %s3
  %s6 = scalar_select 0, %s5, %s3
  $region1: #{tpu_custom_call.1} parent=0
    #allocation4 [shape = 'u8[4096]{0}', space=vmem, size = 0x1000, scoped, tag = 'input window, operand 0, single buffered']
    #allocation5 [shape = 's32[1]{0}', space=sflag, size = 0x4, scoped, tag = 'scoped memory for tpu_custom_call.1']
    #allocation6 [shape = 's32[1]{0}', space=sflag, size = 0x4, scoped, tag = 'scoped memory for tpu_custom_call.1']
    #allocation7 [shape = 'u8[4096]{0}', space=vmem, size = 0x1000, scoped, tag = 'input window, operand 1, single buffered']
    #allocation8 [shape = 's32[1]{0}', space=sflag, size = 0x4, scoped, tag = 'scoped memory for tpu_custom_call.1']
    #allocation9 [shape = 'u8[512]{0}', space=smem, size = 0x200, scoped, tag = 'output window, operand 0, single buffered']
    %7 = vsyncpa [#allocation5], 0
    %8 = vsyncpa [#allocation8], 0
    %9 = vsyncpa [#allocation6], 0
    // Predicated region
    $region2: #{tpu_custom_call.1} parent=1 // pred_check
      _
    $region3: #{tpu_custom_call.1} parent=1 // pred_check_branch
      %11 = sbr.rel (0) target = $region5
    $region4: #{tpu_custom_call.1} parent=1 // pred_region
      %13 = vsyncadd [#allocation5], 0
      %s15 = sshll.u32 %s0, 4
      %s16 = int_to_ptr.hbm [resolvable:$true] %s15
      %s17 = sshll.u32 [#allocation4], 4
      %s18 = int_to_ptr.vmem [resolvable:$true] %s17
      %20 = dma.hbm_to_vmem [thread:$0]  %s16, 128, %s18, [#allocation5]
    $region5: #{tpu_custom_call.1} parent=1 // pred_fallthru
      _
    // Predicated region
    $region6: #{tpu_custom_call.1} parent=1 // pred_check
      _
    $region7: #{tpu_custom_call.1} parent=1 // pred_check_branch
      %22 = sbr.rel (0) target = $region9
    $region8: #{tpu_custom_call.1} parent=1 // pred_region
      %24 = vsyncadd [#allocation8], 0
      %s26 = sshll.u32 %s1, 4
      %s27 = int_to_ptr.hbm [resolvable:$true] %s26
      %s28 = sshll.u32 [#allocation7], 4
      %s29 = int_to_ptr.vmem [resolvable:$true] %s28
      %31 = dma.hbm_to_vmem [thread:$0]  %s27, 128, %s29, [#allocation8]
    $region9: #{tpu_custom_call.1} parent=1 // pred_fallthru
      _
    // Predicated region
    $region10: #{tpu_custom_call.1} parent=1 // pred_check
      _
    $region11: #{tpu_custom_call.1} parent=1 // pred_check_branch
      %33 = sbr.rel (0) target = $region13
    $region12: #{tpu_custom_call.1} parent=1 // pred_region
      %35 = dma.done [#allocation5], 128
    $region13: #{tpu_custom_call.1} parent=1 // pred_fallthru
      _
    // Predicated region
    $region14: #{tpu_custom_call.1} parent=1 // pred_check
      _
    $region15: #{tpu_custom_call.1} parent=1 // pred_check_branch
      %37 = sbr.rel (0) target = $region17
    $region16: #{tpu_custom_call.1} parent=1 // pred_region
      %39 = dma.done [#allocation8], 128
    $region17: #{tpu_custom_call.1} parent=1 // pred_fallthru
      _
    %p41 = scmp.eq.s32.totalorder 0, 0
    // Predicated region
    $region18: #{tpu_custom_call.1} parent=1 // pred_check
      %p42 = pneg %p41
    $region19: #{tpu_custom_call.1} parent=1 // pred_check_branch
      %44 = sbr.rel (%p42) target = $region21
    $region20: #{tpu_custom_call.1} parent=1 // pred_region
      %vm45 = vcmask 64512
      %46 = vst.msk [vmem:[#allocation2] sm:$0xff] %vm45, 0.0
      %vm47 = vcmask 15360
      %48 = vst.msk [vmem:[#allocation3] sm:$0xff] %vm47, 0.0
    $region21: #{tpu_custom_call.1} parent=1 // pred_fallthru
      _
    %v49 = vld [vmem:[#allocation4] sm:$0xff]
    %v50 = vld [vmem:[#allocation7] sm:$0xff]
    %v51 = vld [vmem:[#allocation3] sm:$0xff]
    %v52 = vmul.f32 %v49, %v49
    %53 = vadd.xlane.f32.xlu0 %v52
    %v54 = vpop.xlane.xlu0 %53
    %v55 = vadd.f32 %v51, %v54
    %vm56 = vcmask 7168
    %57 = vst.msk [vmem:[#allocation3] sm:$0xff] %vm56, %v55
    %v58 = vld [vmem:[#allocation3] sm:$0xff]
    %v59 = vmul.f32 %v50, %v50
    %60 = vadd.xlane.f32.xlu0 %v59
    %v61 = vpop.xlane.xlu0 %60
    %v62 = vadd.f32 %v58, %v61
    %vm63 = vcmask 15368
    %64 = vst.msk [vmem:[#allocation3] sm:$0xff] %vm63, %v62
    %v65 = vpack.c.bf16 %v49, %v49
    %v66 = vpack.c.bf16 %v50, %v50
    %v67 = vld [vmem:[#allocation2] sm:$0xff]
    %68 = vmatpush.bf16.xpose.msra.mxu0 0
    %69 = vmatpush.bf16.xpose.msra.mxu0 0
    %70 = vmatpush.bf16.xpose.msra.mxu0 0
    %71 = vmatpush.bf16.xpose.msra.mxu0 0
    %72 = vmatpush.bf16.xpose.msra.mxu0 0
    %73 = vmatpush.bf16.xpose.msra.mxu0 0
    %74 = vmatpush.bf16.xpose.msra.mxu0 0
    %75 = vmatpush.bf16.xpose.msra.mxu0 %v66
    %76 = vmatmul.bf16.gmra.mxu0 %v65
    %v77 = vpop.f32.mrf.mxu0
    %v78 = vadd.f32 0.0, %v77
    %v79 = vpop.f32.mrf.mxu0
    %80 = vdwg.mxu0
    %v81 = vadd.f32 %v67, %v78
    %vm82 = vcmask 64512
    %83 = vst.msk [vmem:[#allocation2] sm:$0xff] %vm82, %v81
    // Predicated region
    $region22: #{tpu_custom_call.1} parent=1 // pred_check
      %p84 = pneg %p41
    $region23: #{tpu_custom_call.1} parent=1 // pred_check_branch
      %86 = sbr.rel (%p84) target = $region25
    $region24: #{tpu_custom_call.1} parent=1 // pred_region
      %v87 = vld [vmem:[#allocation3] sm:$0xff]
      %v88 = vadd.f32 %v87, 1e-12
      %v89 = vrsqrt.pop %v88
      %v90 = vmul.f32 %v89, %v88
      %v91 = vmul.f32 %v90, %v89
      %v92 = vmul.f32 0.5, %v91
      %v93 = vsub.f32 1.5, %v92
      %v94 = vmul.f32 %v89, %v93
      %vm95 = vweird.f32 %v88
      %vm96 = vweird.f32 %v89
      %vm97 = vmor %vm95, %vm96
      %v98 = vsel %vm97, %v89, %v94
      %100 = vrot.lane.b32.xlu0 %v98, 127
      %v101 = vpop.permute.xlu0 %100
      %103 = vxpose.xlu0.b32.start [1/16] %v101, 128
      %104 = vxpose.xlu0.b32.cont [2/16] 0.0, 128
      %105 = vxpose.xlu0.b32.cont [3/16] 0.0, 128
      %106 = vxpose.xlu0.b32.cont [4/16] 0.0, 128
      %107 = vxpose.xlu0.b32.cont [5/16] 0.0, 128
      %108 = vxpose.xlu0.b32.cont [6/16] 0.0, 128
      %109 = vxpose.xlu0.b32.cont [7/16] 0.0, 128
      %110 = vxpose.xlu0.b32.cont [8/16] 0.0, 128
      %111 = vxpose.xlu0.b32.cont [9/16] 0.0, 128
      %112 = vxpose.xlu0.b32.cont [10/16] 0.0, 128
      %113 = vxpose.xlu0.b32.cont [11/16] 0.0, 128
      %114 = vxpose.xlu0.b32.cont [12/16] 0.0, 128
      %115 = vxpose.xlu0.b32.cont [13/16] 0.0, 128
      %116 = vxpose.xlu0.b32.cont [14/16] 0.0, 128
      %117 = vxpose.xlu0.b32.cont [15/16] 0.0, 128
      %118 = vxpose.xlu0.b32.end [16/16] 0.0, 128
      %v119 = vpop.trf.xlu0
      %v120 = vpop.trf.xlu0
      %v121 = vpop.trf.xlu0
      %v122 = vpop.trf.xlu0
      %v123 = vpop.trf.xlu0
      %v124 = vpop.trf.xlu0
      %v125 = vpop.trf.xlu0
      %v126 = vpop.trf.xlu0
      %v127 = vpop.trf.xlu0
      %v128 = vpop.trf.xlu0
      %v129 = vpop.trf.xlu0
      %v130 = vpop.trf.xlu0
      %v131 = vpop.trf.xlu0
      %v132 = vpop.trf.xlu0
      %v133 = vpop.trf.xlu0
      %v134 = vpop.trf.xlu0
      %v135 = vld [vmem:[#allocation2] sm:$0xff]
      %136 = vset.pattern.permute.xlu0 0
      %137 = vperm.xlu0 %136, %v98
      %v138 = vpop.permute.xlu0 %137
      %v140 = vmul.f32 %v135, %v138
      %v141 = vperm.slane %v119, 0
      %v142 = vmul.f32 %v140, %v141
      %v143 = vsel %vm82, %v142, -inf
      %144 = vmax.xlane.f32.xlu0 %v143
      %v145 = vpop.xlane.xlu0 %144
      %v146 = vsub.f32 %v142, %v145
      %v147 = vmul.f32 %v146, 1.442695
      %v148 = vpow.pop %v147
      %v149 = vsel %vm82, %v148, 0.0
      %150 = vadd.xlane.f32.xlu0 %v149
      %v151 = vpop.xlane.xlu0 %150
      %v152 = vlog2.pop %v151
      %v153 = vmul.f32 %v152, 0.6931472
      %v154 = vadd.f32 %v153, %v145
      %v155 = vrot.slane %v143, 4
      %v156 = vmax.f32 %v143, %v155
      %v157 = vrot.slane %v156, 2
      %v158 = vmax.f32 %v156, %v157
      %v159 = vrot.slane %v158, 1
      %v160 = vmax.f32 %v158, %v159
      %v161 = vsub.f32 %v142, %v160
      %v162 = vmul.f32 %v161, 1.442695
      %v163 = vpow.pop %v162
      %v164 = vsel %vm82, %v163, 0.0
      %v165 = vrot.slane %v164, 4
      %v166 = vadd.f32 %v164, %v165
      %v167 = vrot.slane %v166, 2
      %v168 = vadd.f32 %v166, %v167
      %v169 = vrot.slane %v168, 1
      %v170 = vadd.f32 %v168, %v169
      %v171 = vlog2.pop %v170
      %v172 = vmul.f32 %v171, 0.6931472
      %v173 = vadd.f32 %v172, %v160
      %v174 = vrcp.pop %v170
      %v175 = vmul.f32 %v170, %v174
      %v176 = vsub.f32 1.0, %v175
      %v177 = vmul.f32 %v174, %v176
      %v178 = vadd.f32 %v174, %v177
      %vm179 = vweird.f32 %v170
      %vm180 = vweird.f32 %v174
      %vm181 = vmor %vm179, %vm180
      %v182 = vsel %vm181, %v174, %v178
      %v183 = vand.u32 2147483647, %v170
      %vm184 = vcmp.eq.f32.partialorder %v183, 8.507059e+37
      %v185 = vand.u32 %v170, 2147483648
      %v186 = vor.u32 1.1754944e-38, %v185
      %v187 = vsel %vm184, %v186, %v182
      %v188 = vmul.f32 1.0, %v187
      %v189 = vmul.f32 %v163, %v142
      %v190 = vsel %vm82, %v189, 0.0
      %v191 = vrot.slane %v190, 4
      %v192 = vadd.f32 %v190, %v191
      %v193 = vrot.slane %v192, 2
      %v194 = vadd.f32 %v192, %v193
      %v195 = vrot.slane %v194, 1
      %v196 = vadd.f32 %v194, %v195
      %v197 = vmul.f32 %v196, %v188
      %vm198 = vcmask 57344
      %v199 = vsel %vm198, %v197, 0.0
      %200 = vadd.xlane.f32.xlu0 %v199
      %v201 = vpop.xlane.xlu0 %200
      %v202 = vrot.slane %v201, 4
      %v203 = vadd.f32 %v201, %v202
      %v204 = vrot.slane %v203, 2
      %v205 = vadd.f32 %v203, %v204
      %v206 = vrot.slane %v205, 1
      %v207 = vadd.f32 %v205, %v206
      %s208 = vtos %v207
      %v209 = vmul.f32 %v163, %v188
      %210 = vxpose.xlu0.b32.start [1/16] %v142, 128
      %211 = vxpose.xlu0.b32.cont [2/16] 0.0, 128
      %212 = vxpose.xlu0.b32.cont [3/16] 0.0, 128
      %213 = vxpose.xlu0.b32.cont [4/16] 0.0, 128
      %214 = vxpose.xlu0.b32.cont [5/16] 0.0, 128
      %215 = vxpose.xlu0.b32.cont [6/16] 0.0, 128
      %216 = vxpose.xlu0.b32.cont [7/16] 0.0, 128
      %217 = vxpose.xlu0.b32.cont [8/16] 0.0, 128
      %218 = vxpose.xlu0.b32.cont [9/16] 0.0, 128
      %219 = vxpose.xlu0.b32.cont [10/16] 0.0, 128
      %220 = vxpose.xlu0.b32.cont [11/16] 0.0, 128
      %221 = vxpose.xlu0.b32.cont [12/16] 0.0, 128
      %222 = vxpose.xlu0.b32.cont [13/16] 0.0, 128
      %223 = vxpose.xlu0.b32.cont [14/16] 0.0, 128
      %224 = vxpose.xlu0.b32.cont [15/16] 0.0, 128
      %225 = vxpose.xlu0.b32.end [16/16] 0.0, 128
      %v226 = vpop.trf.xlu0
      %v227 = vpop.trf.xlu0
      %v228 = vpop.trf.xlu0
      %v229 = vpop.trf.xlu0
      %v230 = vpop.trf.xlu0
      %v231 = vpop.trf.xlu0
      %v232 = vpop.trf.xlu0
      %v233 = vpop.trf.xlu0
      %v234 = vpop.trf.xlu0
      %v235 = vpop.trf.xlu0
      %v236 = vpop.trf.xlu0
      %v237 = vpop.trf.xlu0
      %v238 = vpop.trf.xlu0
      %v239 = vpop.trf.xlu0
      %v240 = vpop.trf.xlu0
      %v241 = vpop.trf.xlu0
      %v242 = vmul.f32 %v209, %v226
      %v243 = vsel %vm82, %v242, 0.0
      %244 = vadd.xlane.f32.xlu0 %v243
      %v245 = vpop.xlane.xlu0 %244
      %v246 = vrot.slane %v245, 4
      %v247 = vadd.f32 %v245, %v246
      %v248 = vrot.slane %v247, 2
      %v249 = vadd.f32 %v247, %v248
      %v250 = vrot.slane %v249, 1
      %v251 = vadd.f32 %v249, %v250
      %s252 = vtos %v251
      %s253 = ssub.f32 %s208, %s252
      %v254 = vsel %vm56, %v154, 0.0
      %255 = vadd.xlane.f32.xlu0 %v254
      %v256 = vpop.xlane.xlu0 %255
      %v257 = vrot.slane %v256, 4
      %v258 = vadd.f32 %v256, %v257
      %v259 = vrot.slane %v258, 2
      %v260 = vadd.f32 %v258, %v259
      %v261 = vrot.slane %v260, 1
      %v262 = vadd.f32 %v260, %v261
      %s263 = vtos %v262
      %s264 = sadd.f32 %s253, %s263
      %v265 = vsel %vm198, %v173, 0.0
      %266 = vadd.xlane.f32.xlu0 %v265
      %v267 = vpop.xlane.xlu0 %266
      %v268 = vrot.slane %v267, 4
      %v269 = vadd.f32 %v267, %v268
      %v270 = vrot.slane %v269, 2
      %v271 = vadd.f32 %v269, %v270
      %v272 = vrot.slane %v271, 1
      %v273 = vadd.f32 %v271, %v272
      %s274 = vtos %v273
      %s275 = ssub.f32 %s264, %s274
      %v276 = vrcp.pop 8.0
      %v277 = vmul.f32 8.0, %v276
      %v278 = vsub.f32 1.0, %v277
      %v279 = vmul.f32 %v276, %v278
      %v280 = vadd.f32 %v276, %v279
      %vm281 = vweird.f32 %v276
      %v282 = vsel %vm281, %v276, %v280
      %s283 = vtos %v282
      %s284 = smul.f32 %s275, %s283
      %s285 = scalar_lea.smem [#allocation9], 0
      %286 = sst [smem:[%s285]] %s284
    $region25: #{tpu_custom_call.1} parent=1 // pred_fallthru
      _
    // Predicated region
    $region26: #{tpu_custom_call.1} parent=1 // pred_check
      _
    $region27: #{tpu_custom_call.1} parent=1 // pred_check_branch
      %288 = sbr.rel (0) target = $region29
    $region28: #{tpu_custom_call.1} parent=1 // pred_region
      %290 = vsyncadd [#allocation6], 0
      %s292 = sshll.u32 %s2, 4
      %s293 = int_to_ptr.hbm [resolvable:$true] %s292
      %295 = dma.smem_to_hbm [#allocation9], 16, %s293, [#allocation6]
    $region29: #{tpu_custom_call.1} parent=1 // pred_fallthru
      _
    // Predicated region
    $region30: #{tpu_custom_call.1} parent=1 // pred_check
      _
    $region31: #{tpu_custom_call.1} parent=1 // pred_check_branch
      %297 = sbr.rel (0) target = $region33
    $region32: #{tpu_custom_call.1} parent=1 // pred_region
      %299 = dma.done [#allocation6], 16
    $region33: #{tpu_custom_call.1} parent=1 // pred_fallthru
      _
    %300 = sfence
    %301 = vsyncpa [#allocation5], 1
    %302 = vsyncpa [#allocation8], 1
    %303 = vsyncpa [#allocation6], 1

</llo_original>
